<compile_context>
chip_gen: v7x
topology: tpu7x:2x2x1
jax: 0.10.0
libtpu: 0.0.40
codegen_flags: <defaults>
</compile_context>

<pallas_src>
import jax
import jax.numpy as jnp
from jax.experimental import pallas as pl
from jax.experimental.pallas import tpu as pltpu

NEG_SLOPE = 0.2
_VMEM_BUDGET = 24 << 20   # pipeline-buffer budget; safe for v7x 32 MiB scoped


# ---------------------------------------------------------------------------
# Kernel builder.
#   grid = (nh, kt): nh "parallel" H-blocks (megacore), kt "arbitrary" K tiles.
#   refs: act_0[, act_1], w1, b1, w2, out_0[, out_1][, acc_scratch]
#     act_i : [n_i, tk]       native-dtype activations (cast to bf16 in-kernel)
#     w1    : [tk, hb] bf16 ; b1, w2 : [1, hb] f32
#     out_i : [1, n_i, 1] f32 partial logits for this H-block (no b2)
#     acc   : [sum(n_i), hb] f32 scratch (only when kt > 1)
# ---------------------------------------------------------------------------
def _build_disc_kernel(n_rows, multi_k):
    n_parts = len(n_rows)

    def kernel(*refs):
        act_refs = refs[:n_parts]
        w1_ref, b1_ref, w2_ref = refs[n_parts:n_parts + 3]
        out_refs = refs[n_parts + 3:n_parts + 3 + n_parts]

        def lhs_tile():
            # One stacked LHS -> a single MXU pass per W1 tile for fake+real.
            tiles = [r[...] for r in act_refs]
            t = tiles[0] if n_parts == 1 else jnp.concatenate(tiles, axis=0)
            return t.astype(jnp.bfloat16)        # VPU cast, hidden under W1 DMA

        def epilogue(acc):
            pre = acc + b1_ref[...]
            h = jnp.maximum(pre, NEG_SLOPE * pre)          # LeakyReLU(0.2)
            # width-1 second layer: VPU multiply + XLU lane reduction (no MXU)
            part = jnp.sum(h * w2_ref[...], axis=-1, keepdims=True)  # [n_tot,1]
            start = 0
            for r, n in zip(out_refs, n_rows):
                r[...] = part[start:start + n].reshape(r.shape)
                start += n

        if multi_k:
            acc_ref = refs[-1]
            k = pl.program_id(1)

            @pl.when(k == 0)
            def _():
                acc_ref[...] = jnp.zeros_like(acc_ref)

            acc_ref[...] += jnp.dot(lhs_tile(), w1_ref[...],
                                    preferred_element_type=jnp.float32)

            @pl.when(k == pl.num_programs(1) - 1)
            def _():
                epilogue(acc_ref[...])
        else:
            # Whole W1 (per H-block) fits VMEM: single shot, no scratch,
            # no init/finalize branches.
            epilogue(jnp.dot(lhs_tile(), w1_ref[...],
                             preferred_element_type=jnp.float32))

    return kernel


# ---------------------------------------------------------------------------
# VMEM / H aware K-tile planner.
# ---------------------------------------------------------------------------
def _plan_k_tiles(F, hb, n_tot, act_bytes, budget):
    def est(tk):
        w1_buf = 2 * tk * hb * 2               # double-buffered bf16 W1 tile
        act_buf = 2 * n_tot * tk * act_bytes   # double-buffered LHS tiles
        acc = n_tot * hb * 4                   # f32 accumulator scratch
        misc = 4 * 8 * hb * 4                  # b1/w2 buffers (sublane padded)
        return w1_buf + act_buf + acc + misc

    if est(F) <= budget:
        return F, est(F)                       # single K step (kt == 1)
    if F % 128 != 0:
        return None, None                      # caller zero-pads F to 128x
    m = F // 128
    for d in range(m, 0, -1):
        if m % d == 0 and est(128 * d) <= budget:
            return 128 * d, est(128 * d)
    return 128, est(128)                       # minimum lane-aligned tile


# ---------------------------------------------------------------------------
# G_D.forward equivalent.
# ---------------------------------------------------------------------------
def g_d_forward(params, G_z, x=None, vmem_budget=_VMEM_BUDGET):
    w1, b1, w2, b2 = params                    # w1: [F,H] bf16; b1,w2: [1,H] f32
    F, H = w1.shape

    feats = [G_z.reshape(G_z.shape[0], -1)]    # native dtype; reshape is free
    if x is not None:
        feats.append(x.reshape(x.shape[0], -1))
    n_rows = tuple(f.shape[0] for f in feats)
    n_tot = sum(n_rows)
    act_bytes = feats[0].dtype.itemsize

    # Megacore: split H across two "parallel" blocks only when wide enough.
    nh = 2 if (H >= 512 and H % 256 == 0) else 1
    hb = H // nh

    tk, est = _plan_k_tiles(F, hb, n_tot, act_bytes, vmem_budget)
    if tk is None:
        # Ragged feature dim: one-time zero pad so K tiles are lane aligned.
        # TODO(synk): a masked last K tile would avoid copying W1 here.
        F_pad = ((F + 127) // 128) * 128
        pad = F_pad - F
        w1 = jnp.pad(w1, ((0, pad), (0, 0)))
        feats = [jnp.pad(f, ((0, 0), (0, pad))) for f in feats]
        F = F_pad
        tk, est = _plan_k_tiles(F, hb, n_tot, act_bytes, vmem_budget)
    kt = F // tk
    multi_k = kt > 1

    act_specs = [pl.BlockSpec((n, tk), lambda j, k: (0, k)) for n in n_rows]
    w1_spec = pl.BlockSpec((tk, hb), lambda j, k: (k, j))
    b1_spec = pl.BlockSpec((1, hb), lambda j, k: (0, j))
    w2_spec = pl.BlockSpec((1, hb), lambda j, k: (0, j))
    out_specs = tuple(pl.BlockSpec((1, n, 1), lambda j, k: (j, 0, 0))
                      for n in n_rows)
    out_shapes = tuple(jax.ShapeDtypeStruct((nh, n, 1), jnp.float32)
                       for n in n_rows)
    scratch = [pltpu.VMEM((n_tot, hb), jnp.float32)] if multi_k else []

    cost = pl.CostEstimate(
        flops=2 * n_tot * F * H + 4 * n_tot * H,
        transcendentals=0,
        bytes_accessed=F * H * 2 + n_tot * F * act_bytes + 2 * H * 4 + n_tot * 4,
    )
    cparams = pltpu.CompilerParams(
        dimension_semantics=("parallel", "arbitrary"),
        vmem_limit_bytes=int(min(48 << 20, max(16 << 20, 2 * est))),
    )
    # NOTE: pipeline_mode=pl.Buffered(3) on w1_spec is a possible further win
    # when batch is tiny (AI ~ batch); left at default depth (measure first).

    grid_spec = pltpu.PrefetchScalarGridSpec(
        num_scalar_prefetch=0,
        grid=(nh, kt),
        in_specs=act_specs + [w1_spec, b1_spec, w2_spec],
        out_specs=out_specs,
        scratch_shapes=scratch,
    )
    outs = pl.pallas_call(
        _build_disc_kernel(n_rows, multi_k),
        out_shape=out_shapes,
        grid_spec=grid_spec,
        compiler_params=cparams,
        cost_estimate=cost,
    )(*feats, w1, b1, w2)
    if not isinstance(outs, (list, tuple)):
        outs = (outs,)

    # Combine per-H-block partial logits and add output bias (tiny (n,1) ops).
    logits = [o.sum(axis=0) + b2 for o in outs]
    if x is not None:
        return logits[0], logits[1]
    return logits[0]


def init_discriminator_params(key, in_features, hidden):
    k1, k2, k3, k4 = jax.random.split(key, 4)
    s1 = 1.0 / jnp.sqrt(in_features)
    s2 = 1.0 / jnp.sqrt(hidden)
    # W1 stored bf16 (MXU input dtype + halves the bound HBM stream).
    w1 = jax.random.uniform(k1, (in_features, hidden), jnp.float32,
                            -s1, s1).astype(jnp.bfloat16)
    b1 = jax.random.uniform(k2, (1, hidden), jnp.float32, -s1, s1)
    w2 = jax.random.uniform(k3, (1, hidden), jnp.float32, -s2, s2)
    b2 = jax.random.uniform(k4, (1,), jnp.float32, -s2, s2)
    return w1, b1, w2, b2


def _reference(params, feats_f32):
    w1, b1, w2, b2 = params
    h = jnp.dot(feats_f32.astype(jnp.bfloat16), w1,
                preferred_element_type=jnp.float32) + b1
    h = jnp.maximum(h, NEG_SLOPE * h)
    return jnp.sum(h * w2, axis=-1, keepdims=True) + b2


if __name__ == "__main__":
    key = jax.random.PRNGKey(0)
    k_gz, k_x, k_p, k_p2 = jax.random.split(key, 4)

    # Small NCHW shapes: batch=2, channels=4, spatial=16x16 -> F = 1024
    B, C, Himg, Wimg = 2, 4, 16, 16
    HIDDEN = 128
    G_z = jax.random.normal(k_gz, (B, C, Himg, Wimg), jnp.float32)     # "fake"
    x_real = jax.random.normal(k_x, (B, C, Himg, Wimg), jnp.float32)   # "real"
    Fdim = C * Himg * Wimg

    params = init_discriminator_params(k_p, Fdim, HIDDEN)
    feat_all = jnp.concatenate([G_z, x_real], 0).reshape(2 * B, -1)
    ref = _reference(params, feat_all)

    # Branch 1: with real data -> (D(G_z), D(x)) split, fused single-shot.
    d_fake, d_real = g_d_forward(params, G_z, x_real)
    d_fake = jax.block_until_ready(d_fake)
    d_real = jax.block_until_ready(d_real)
    assert d_fake.shape == (B, 1) and d_real.shape == (B, 1)
    got = jnp.concatenate([d_fake, d_real], 0)
    assert jnp.allclose(got, ref, atol=2e-3, rtol=2e-3)

    # Branch 2: without real data -> D(G_z)
    d_only = jax.block_until_ready(g_d_forward(params, G_z))
    assert d_only.shape == (B, 1)
    assert jnp.allclose(d_only, ref[:B], atol=2e-3, rtol=2e-3)

    # Also exercise the K-tiled accumulator path (tiny forced VMEM budget).
    d_fake_t, d_real_t = g_d_forward(params, G_z, x_real,
                                     vmem_budget=192 * 1024)
    got_t = jnp.concatenate([jax.block_until_ready(d_fake_t), d_real_t], 0)
    assert jnp.allclose(got_t, ref, atol=2e-3, rtol=2e-3)

    # Also exercise the megacore H-split path (H=512 -> 2 parallel H blocks).
    params2 = init_discriminator_params(k_p2, Fdim, 512)
    ref2 = _reference(params2, feat_all)
    d_fake2, d_real2 = g_d_forward(params2, G_z, x_real)
    got2 = jnp.concatenate([jax.block_until_ready(d_fake2), d_real2], 0)
    assert jnp.allclose(got2, ref2, atol=2e-3, rtol=2e-3)

    print("KERNEL_OK")
</pallas_src>

<mosaic_0001>
module attributes {stable_mosaic.version = 11 : i64} {
  func.func @kernel(%arg0: i32, %arg1: i32, %arg2: memref<2x1024xf32, #tpu.memory_space<vmem>>, %arg3: memref<2x1024xf32, #tpu.memory_space<vmem>>, %arg4: memref<1024x128xbf16, #tpu.memory_space<vmem>>, %arg5: memref<1x128xf32, #tpu.memory_space<vmem>>, %arg6: memref<1x128xf32, #tpu.memory_space<vmem>>, %arg7: memref<1x2x1xf32, #tpu.memory_space<vmem>>, %arg8: memref<1x2x1xf32, #tpu.memory_space<vmem>>) attributes {dimension_semantics = [#tpu.dimension_semantics<parallel>, #tpu.dimension_semantics<arbitrary>], iteration_bounds = array<i64: 1, 1>, scalar_prefetch = 0 : i64, scratch_operands = 0 : i64, tpu.core_type = #tpu.core_type<tc>, window_params = [{transform_indices = @transform_0, window_bounds = array<i64: 2, 1024>}, {transform_indices = @transform_1, window_bounds = array<i64: 2, 1024>}, {transform_indices = @transform_2, window_bounds = array<i64: 1024, 128>}, {transform_indices = @transform_3, window_bounds = array<i64: 1, 128>}, {transform_indices = @transform_4, window_bounds = array<i64: 1, 128>}, {transform_indices = @transform_5, window_bounds = array<i64: 1, 2, 1>}, {transform_indices = @transform_6, window_bounds = array<i64: 1, 2, 1>}]} {
    %c0 = arith.constant 0 : index
    %c0_0 = arith.constant 0 : index
    %0 = vector.load %arg2[%c0, %c0_0] : memref<2x1024xf32, #tpu.memory_space<vmem>>, vector<2x1024xf32>
    %c0_1 = arith.constant 0 : index
    %c0_2 = arith.constant 0 : index
    %1 = vector.load %arg3[%c0_1, %c0_2] : memref<2x1024xf32, #tpu.memory_space<vmem>>, vector<2x1024xf32>
    %2 = tpu.concatenate %0, %1 in 0 : vector<2x1024xf32>, vector<2x1024xf32> -> vector<4x1024xf32>
    %3 = arith.truncf %2 : vector<4x1024xf32> to vector<4x1024xbf16>
    %c0_3 = arith.constant 0 : index
    %c0_4 = arith.constant 0 : index
    %4 = vector.load %arg4[%c0_3, %c0_4] : memref<1024x128xbf16, #tpu.memory_space<vmem>>, vector<1024x128xbf16>
    %cst = arith.constant dense<0.000000e+00> : vector<4x128xf32>
    %5 = tpu.matmul %3, %4, %cst {dimension_numbers = #tpu.dot_dimension_numbers<[1], [0], [0], [1], [0, 0, 1, 1], [], []>} : vector<4x1024xbf16>, vector<1024x128xbf16>, vector<4x128xf32> -> vector<4x128xf32>
    %c0_5 = arith.constant 0 : index
    %c0_6 = arith.constant 0 : index
    %6 = vector.load %arg5[%c0_5, %c0_6] : memref<1x128xf32, #tpu.memory_space<vmem>>, vector<1x128xf32>
    %7 = vector.broadcast %6 : vector<1x128xf32> to vector<4x128xf32>
    %8 = arith.addf %5, %7 : vector<4x128xf32>
    %cst_7 = arith.constant 2.000000e-01 : f32
    %9 = vector.broadcast %cst_7 : f32 to vector<4x128xf32>
    %10 = arith.mulf %9, %8 : vector<4x128xf32>
    %11 = arith.maximumf %8, %10 : vector<4x128xf32>
    %c0_8 = arith.constant 0 : index
    %c0_9 = arith.constant 0 : index
    %12 = vector.load %arg6[%c0_8, %c0_9] : memref<1x128xf32, #tpu.memory_space<vmem>>, vector<1x128xf32>
    %13 = vector.broadcast %12 : vector<1x128xf32> to vector<4x128xf32>
    %14 = arith.mulf %11, %13 : vector<4x128xf32>
    %cst_10 = arith.constant dense<0.000000e+00> : vector<4xf32>
    %15 = vector.multi_reduction <add>, %14, %cst_10 [1] : vector<4x128xf32> to vector<4xf32>
    %16 = vector.shape_cast %15 : vector<4xf32> to vector<4x1xf32>
    %17 = vector.extract_strided_slice %16 {offsets = [0, 0], sizes = [2, 1], strides = [1, 1]} : vector<4x1xf32> to vector<2x1xf32>
    %18 = vector.shape_cast %17 : vector<2x1xf32> to vector<1x2x1xf32>
    %c0_11 = arith.constant 0 : index
    %c0_12 = arith.constant 0 : index
    %c0_13 = arith.constant 0 : index
    %19 = vector.load %arg7[%c0_11, %c0_12, %c0_13] : memref<1x2x1xf32, #tpu.memory_space<vmem>>, vector<1x2x1xf32>
    tpu.vector_store %arg7[%c0_11, %c0_12, %c0_13], %18 {strides = array<i32>} : memref<1x2x1xf32, #tpu.memory_space<vmem>>, vector<1x2x1xf32>,
    %20 = vector.extract_strided_slice %16 {offsets = [2, 0], sizes = [2, 1], strides = [1, 1]} : vector<4x1xf32> to vector<2x1xf32>
    %21 = vector.shape_cast %20 : vector<2x1xf32> to vector<1x2x1xf32>
    %c0_14 = arith.constant 0 : index
    %c0_15 = arith.constant 0 : index
    %c0_16 = arith.constant 0 : index
    %22 = vector.load %arg8[%c0_14, %c0_15, %c0_16] : memref<1x2x1xf32, #tpu.memory_space<vmem>>, vector<1x2x1xf32>
    tpu.vector_store %arg8[%c0_14, %c0_15, %c0_16], %21 {strides = array<i32>} : memref<1x2x1xf32, #tpu.memory_space<vmem>>, vector<1x2x1xf32>,
    return
  }
  func.func @transform_0(%arg0: i32, %arg1: i32) -> (i32, i32) {
    %c0_i32 = arith.constant 0 : i32
    %c0_i32_0 = arith.constant 0 : i32
    return %c0_i32, %arg1 : i32, i32
  }
  func.func @transform_1(%arg0: i32, %arg1: i32) -> (i32, i32) {
    %c0_i32 = arith.constant 0 : i32
    %c0_i32_0 = arith.constant 0 : i32
    return %c0_i32, %arg1 : i32, i32
  }
  func.func @transform_2(%arg0: i32, %arg1: i32) -> (i32, i32) {
    %c0_i32 = arith.constant 0 : i32
    return %arg1, %arg0 : i32, i32
  }
  func.func @transform_3(%arg0: i32, %arg1: i32) -> (i32, i32) {
    %c0_i32 = arith.constant 0 : i32
    %c0_i32_0 = arith.constant 0 : i32
    return %c0_i32, %arg0 : i32, i32
  }
  func.func @transform_4(%arg0: i32, %arg1: i32) -> (i32, i32) {
    %c0_i32 = arith.constant 0 : i32
    %c0_i32_0 = arith.constant 0 : i32
    return %c0_i32, %arg0 : i32, i32
  }
  func.func @transform_5(%arg0: i32, %arg1: i32) -> (i32, i32, i32) {
    %c0_i32 = arith.constant 0 : i32
    %c0_i32_0 = arith.constant 0 : i32
    %c0_i32_1 = arith.constant 0 : i32
    return %arg0, %c0_i32, %c0_i32_0 : i32, i32, i32
  }
  func.func @transform_6(%arg0: i32, %arg1: i32) -> (i32, i32, i32) {
    %c0_i32 = arith.constant 0 : i32
    %c0_i32_0 = arith.constant 0 : i32
    %c0_i32_1 = arith.constant 0 : i32
    return %arg0, %c0_i32, %c0_i32_0 : i32, i32, i32
  }
}

</mosaic_0001>

<llo_original>
// kernel: tpu_custom_call.1
$region0: #{tpu_custom_call.1}
  #allocation0 [shape = 'u32[]', space=smem, size = 0x4, offset = 0x4, fixed_abs, tag = 'smem constant byte address 0x4 - core index']
  #allocation1 [shape = 'u32[144,128]{1,0:T(1,128)}', space=vmem, size = 0x12000, scoped, tag = 'internal scratch']
  %s0 = inlined_call_operand.hbm [shape: f32[2,1024], index: 0, kind: input, shape index: {}]
  %s1 = inlined_call_operand.hbm [shape: f32[2,1024], index: 1, kind: input, shape index: {}]
  %s2 = inlined_call_operand.hbm [shape: bf16[1024,128], index: 2, kind: input, shape index: {}]
  %s3 = inlined_call_operand.vmem [shape: f32[1,128], index: 3, kind: input, shape index: {}]
  %s4 = inlined_call_operand.vmem [shape: f32[1,128], index: 4, kind: input, shape index: {}]
  %s5 = inlined_call_operand.vmem [shape: f32[1,2,1], index: 5, kind: output, shape index: {0}]
  %s6 = inlined_call_operand.vmem [shape: f32[1,2,1], index: 6, kind: output, shape index: {1}]
  %7 = xla_tuple %s5, %s6
  %s8 = sld [smem:[#allocation0]]
  $region50: #{tpu_custom_call.1} parent=0
    _
  %s10 = ssub.s32 1, %s8
  %s11 = scalar_select 0, %s10, %s8
  $region1: #{tpu_custom_call.1} parent=0
    #allocation2 [shape = 'u8[8192]{0}', space=vmem, size = 0x2000, scoped, tag = 'input window, operand 0, single buffered']
    #allocation3 [shape = 's32[1]{0}', space=sflag, size = 0x4, scoped, tag = 'scoped memory for tpu_custom_call.1']
    #allocation4 [shape = 'u8[8192]{0}', space=vmem, size = 0x2000, scoped, tag = 'input window, operand 1, single buffered']
    #allocation5 [shape = 's32[1]{0}', space=sflag, size = 0x4, scoped, tag = 'scoped memory for tpu_custom_call.1']
    #allocation6 [shape = 'u8[262144]{0}', space=vmem, size = 0x40000, scoped, tag = 'input window, operand 2, single buffered']
    %12 = vsyncpa [#allocation3], 0
    %13 = vsyncpa [#allocation5], 0
    // Predicated region
    $region2: #{tpu_custom_call.1} parent=1 // pred_check
      _
    $region3: #{tpu_custom_call.1} parent=1 // pred_check_branch
      %15 = sbr.rel (0) target = $region5
    $region4: #{tpu_custom_call.1} parent=1 // pred_region
      %s17 = ssub.s32 256, 256
      %18 = vsyncadd [#allocation3], %s17
      %s20 = sshll.u32 [#allocation2], 4
      %s21 = int_to_ptr.vmem [resolvable:$true] %s20
      %23 = dma.hbm_to_vmem [thread:$0]  %s0, 256, %s21, [#allocation3]
    $region5: #{tpu_custom_call.1} parent=1 // pred_fallthru
      _
    // Predicated region
    $region6: #{tpu_custom_call.1} parent=1 // pred_check
      _
    $region7: #{tpu_custom_call.1} parent=1 // pred_check_branch
      %25 = sbr.rel (0) target = $region9
    $region8: #{tpu_custom_call.1} parent=1 // pred_region
      %s27 = ssub.s32 256, 256
      %28 = vsyncadd [#allocation5], %s27
      %s30 = sshll.u32 [#allocation4], 4
      %s31 = int_to_ptr.vmem [resolvable:$true] %s30
      %33 = dma.hbm_to_vmem [thread:$0]  %s1, 256, %s31, [#allocation5]
    $region9: #{tpu_custom_call.1} parent=1 // pred_fallthru
      _
    // Predicated region
    $region10: #{tpu_custom_call.1} parent=1 // pred_check
      _
    $region11: #{tpu_custom_call.1} parent=1 // pred_check_branch
      %35 = sbr.rel (0) target = $region13
    $region12: #{tpu_custom_call.1} parent=1 // pred_region
      %s37 = ssub.s32 8192, 8192
      %38 = vsyncadd [#allocation5], %s37
      %s39 = sshll.u32 [#allocation6], 4
      %s40 = int_to_ptr.vmem [resolvable:$true] %s39
      %45 = dma.hbm_to_vmem [thread:$0]  %s2, 8192, %s40, [#allocation5], 64, 64, 4
    $region13: #{tpu_custom_call.1} parent=1 // pred_fallthru
      _
    // Predicated region
    $region14: #{tpu_custom_call.1} parent=1 // pred_check
      _
    $region15: #{tpu_custom_call.1} parent=1 // pred_check_branch
      %47 = sbr.rel (0) target = $region17
    $region16: #{tpu_custom_call.1} parent=1 // pred_region
      _
    $region17: #{tpu_custom_call.1} parent=1 // pred_fallthru
      _
    // Predicated region
    $region18: #{tpu_custom_call.1} parent=1 // pred_check
      _
    $region19: #{tpu_custom_call.1} parent=1 // pred_check_branch
      %49 = sbr.rel (0) target = $region21
    $region20: #{tpu_custom_call.1} parent=1 // pred_region
      _
    $region21: #{tpu_custom_call.1} parent=1 // pred_fallthru
      _
    // Predicated region
    $region22: #{tpu_custom_call.1} parent=1 // pred_check
      _
    $region23: #{tpu_custom_call.1} parent=1 // pred_check_branch
      %51 = sbr.rel (0) target = $region25
    $region24: #{tpu_custom_call.1} parent=1 // pred_region
      %52 = dma.done [#allocation3], 256
    $region25: #{tpu_custom_call.1} parent=1 // pred_fallthru
      _
    // Predicated region
    $region26: #{tpu_custom_call.1} parent=1 // pred_check
      _
    $region27: #{tpu_custom_call.1} parent=1 // pred_check_branch
      %54 = sbr.rel (0) target = $region29
    $region28: #{tpu_custom_call.1} parent=1 // pred_region
      %55 = dma.done [#allocation5], 256
    $region29: #{tpu_custom_call.1} parent=1 // pred_fallthru
      _
    // Predicated region
    $region30: #{tpu_custom_call.1} parent=1 // pred_check
      _
    $region31: #{tpu_custom_call.1} parent=1 // pred_check_branch
      %57 = sbr.rel (0) target = $region33
    $region32: #{tpu_custom_call.1} parent=1 // pred_region
      %58 = dma.done [#allocation5], 8192
    $region33: #{tpu_custom_call.1} parent=1 // pred_fallthru
      _
    %v60 = vld [vmem:[#allocation2] sm:$0xff]
    %v61 = vld [vmem:[#allocation2 + $0x8] sm:$0xff]
    %v62 = vld [vmem:[#allocation4] sm:$0xff]
    %v63 = vld [vmem:[#allocation4 + $0x8] sm:$0xff]
    %v66 = vcombine.high %v60, %v60
    %v68 = vunpack.c.l.s4 1983009808
    %v69 = vunpack.c.0.s8 %v68
    %v70 = vlaneseq
    %v71 = vshrl.u32 %v70, 7
    %v72 = vsub.s32 %v69, %v71
    %v73 = vrot.slane %v60, %v72
    %v75 = vunpack.c.l.s4 1983009808
    %v76 = vunpack.c.0.s8 %v75
    %v77 = vlaneseq
    %v78 = vshrl.u32 %v77, 7
    %v79 = vsub.s32 %v76, %v78
    %v80 = vrot.slane %v66, %v79
    %v81 = vcombine.high %v73, %v73
    %v82 = vcombine.high %v80, %v80
    %v83 = vcombine.high %v61, %v61
    %v85 = vunpack.c.l.s4 1983009808
    %v86 = vunpack.c.0.s8 %v85
    %v87 = vlaneseq
    %v88 = vshrl.u32 %v87, 7
    %v89 = vsub.s32 %v86, %v88
    %v90 = vrot.slane %v61, %v89
    %v92 = vunpack.c.l.s4 1983009808
    %v93 = vunpack.c.0.s8 %v92
    %v94 = vlaneseq
    %v95 = vshrl.u32 %v94, 7
    %v96 = vsub.s32 %v93, %v95
    %v97 = vrot.slane %v83, %v96
    %v98 = vcombine.high %v90, %v90
    %v99 = vcombine.high %v97, %v97
    %v110 = vcombine.low %v62, %v62
    %v112 = vunpack.c.l.s4 1983009808
    %v113 = vunpack.c.0.s8 %v112
    %v114 = vlaneseq
    %v115 = vshrl.u32 %v114, 7
    %v116 = vsub.s32 %v113, %v115
    %v117 = vrot.slane %v110, %v116
    %v119 = vunpack.c.l.s4 1983009808
    %v120 = vunpack.c.0.s8 %v119
    %v121 = vlaneseq
    %v122 = vshrl.u32 %v121, 7
    %v123 = vsub.s32 %v120, %v122
    %v124 = vrot.slane %v62, %v123
    %v125 = vcombine.high %v117, %v117
    %v126 = vcombine.high %v124, %v124
    %v127 = vcombine.low %v63, %v63
    %v129 = vunpack.c.l.s4 1983009808
    %v130 = vunpack.c.0.s8 %v129
    %v131 = vlaneseq
    %v132 = vshrl.u32 %v131, 7
    %v133 = vsub.s32 %v130, %v132
    %v134 = vrot.slane %v127, %v133
    %v136 = vunpack.c.l.s4 1983009808
    %v137 = vunpack.c.0.s8 %v136
    %v138 = vlaneseq
    %v139 = vshrl.u32 %v138, 7
    %v140 = vsub.s32 %v137, %v139
    %v141 = vrot.slane %v63, %v140
    %v142 = vcombine.high %v134, %v134
    %v143 = vcombine.high %v141, %v141
    %vm152 = vcmask 1041408
    %v153 = vsel %vm152, %v73, %v117
    %v154 = vsel %vm152, %v81, %v125
    %v155 = vsel %vm152, %v80, %v124
    %v156 = vsel %vm152, %v82, %v126
    %v157 = vsel %vm152, %v90, %v134
    %v158 = vsel %vm152, %v98, %v142
    %v159 = vsel %vm152, %v97, %v141
    %v160 = vsel %vm152, %v99, %v143
    %v161 = vpack.c.bf16 %v153, %v153
    %v162 = vpack.c.bf16 %v154, %v154
    %v163 = vpack.c.bf16 %v155, %v155
    %v164 = vpack.c.bf16 %v156, %v156
    %v165 = vpack.c.bf16 %v157, %v157
    %v166 = vpack.c.bf16 %v158, %v158
    %v167 = vpack.c.bf16 %v159, %v159
    %v168 = vpack.c.bf16 %v160, %v160
    %v169 = vld [vmem:[#allocation6] sm:$0xf]
    %v170 = vld [vmem:[#allocation6 + $0x4] sm:$0xf]
    %v171 = vld [vmem:[#allocation6 + $0x8] sm:$0xf]
    %v172 = vld [vmem:[#allocation6 + $0xc] sm:$0xf]
    %v173 = vld [vmem:[#allocation6 + $0x10] sm:$0xf]
    %v174 = vld [vmem:[#allocation6 + $0x14] sm:$0xf]
    %v175 = vld [vmem:[#allocation6 + $0x18] sm:$0xf]
    %v176 = vld [vmem:[#allocation6 + $0x1c] sm:$0xf]
    %v177 = vld [vmem:[#allocation6 + $0x20] sm:$0xf]
    %v178 = vld [vmem:[#allocation6 + $0x24] sm:$0xf]
    %v179 = vld [vmem:[#allocation6 + $0x28] sm:$0xf]
    %v180 = vld [vmem:[#allocation6 + $0x2c] sm:$0xf]
    %v181 = vld [vmem:[#allocation6 + $0x30] sm:$0xf]
    %v182 = vld [vmem:[#allocation6 + $0x34] sm:$0xf]
    %v183 = vld [vmem:[#allocation6 + $0x38] sm:$0xf]
    %v184 = vld [vmem:[#allocation6 + $0x3c] sm:$0xf]
    %v185 = vld [vmem:[#allocation6 + $0x40] sm:$0xf]
    %v186 = vld [vmem:[#allocation6 + $0x44] sm:$0xf]
    %v187 = vld [vmem:[#allocation6 + $0x48] sm:$0xf]
    %v188 = vld [vmem:[#allocation6 + $0x4c] sm:$0xf]
    %v189 = vld [vmem:[#allocation6 + $0x50] sm:$0xf]
    %v190 = vld [vmem:[#allocation6 + $0x54] sm:$0xf]
    %v191 = vld [vmem:[#allocation6 + $0x58] sm:$0xf]
    %v192 = vld [vmem:[#allocation6 + $0x5c] sm:$0xf]
    %v193 = vld [vmem:[#allocation6 + $0x60] sm:$0xf]
    %v194 = vld [vmem:[#allocation6 + $0x64] sm:$0xf]
    %v195 = vld [vmem:[#allocation6 + $0x68] sm:$0xf]
    %v196 = vld [vmem:[#allocation6 + $0x6c] sm:$0xf]
    %v197 = vld [vmem:[#allocation6 + $0x70] sm:$0xf]
    %v198 = vld [vmem:[#allocation6 + $0x74] sm:$0xf]
    %v199 = vld [vmem:[#allocation6 + $0x78] sm:$0xf]
    %v200 = vld [vmem:[#allocation6 + $0x7c] sm:$0xf]
    %v201 = vld [vmem:[#allocation6 + $0x80] sm:$0xf]
    %v202 = vld [vmem:[#allocation6 + $0x84] sm:$0xf]
    %v203 = vld [vmem:[#allocation6 + $0x88] sm:$0xf]
    %v204 = vld [vmem:[#allocation6 + $0x8c] sm:$0xf]
    %v205 = vld [vmem:[#allocation6 + $0x90] sm:$0xf]
    %v206 = vld [vmem:[#allocation6 + $0x94] sm:$0xf]
    %v207 = vld [vmem:[#allocation6 + $0x98] sm:$0xf]
    %v208 = vld [vmem:[#allocation6 + $0x9c] sm:$0xf]
    %v209 = vld [vmem:[#allocation6 + $0xa0] sm:$0xf]
    %v210 = vld [vmem:[#allocation6 + $0xa4] sm:$0xf]
    %v211 = vld [vmem:[#allocation6 + $0xa8] sm:$0xf]
    %v212 = vld [vmem:[#allocation6 + $0xac] sm:$0xf]
    %v213 = vld [vmem:[#allocation6 + $0xb0] sm:$0xf]
    %v214 = vld [vmem:[#allocation6 + $0xb4] sm:$0xf]
    %v215 = vld [vmem:[#allocation6 + $0xb8] sm:$0xf]
    %v216 = vld [vmem:[#allocation6 + $0xbc] sm:$0xf]
    %v217 = vld [vmem:[#allocation6 + $0xc0] sm:$0xf]
    %v218 = vld [vmem:[#allocation6 + $0xc4] sm:$0xf]
    %v219 = vld [vmem:[#allocation6 + $0xc8] sm:$0xf]
    %v220 = vld [vmem:[#allocation6 + $0xcc] sm:$0xf]
    %v221 = vld [vmem:[#allocation6 + $0xd0] sm:$0xf]
    %v222 = vld [vmem:[#allocation6 + $0xd4] sm:$0xf]
    %v223 = vld [vmem:[#allocation6 + $0xd8] sm:$0xf]
    %v224 = vld [vmem:[#allocation6 + $0xdc] sm:$0xf]
    %v225 = vld [vmem:[#allocation6 + $0xe0] sm:$0xf]
    %v226 = vld [vmem:[#allocation6 + $0xe4] sm:$0xf]
    %v227 = vld [vmem:[#allocation6 + $0xe8] sm:$0xf]
    %v228 = vld [vmem:[#allocation6 + $0xec] sm:$0xf]
    %v229 = vld [vmem:[#allocation6 + $0xf0] sm:$0xf]
    %v230 = vld [vmem:[#allocation6 + $0xf4] sm:$0xf]
    %v231 = vld [vmem:[#allocation6 + $0xf8] sm:$0xf]
    %v232 = vld [vmem:[#allocation6 + $0xfc] sm:$0xf]
    %v233 = vld [vmem:[#allocation6 + $0x100] sm:$0xf]
    %v234 = vld [vmem:[#allocation6 + $0x104] sm:$0xf]
    %v235 = vld [vmem:[#allocation6 + $0x108] sm:$0xf]
    %v236 = vld [vmem:[#allocation6 + $0x10c] sm:$0xf]
    %v237 = vld [vmem:[#allocation6 + $0x110] sm:$0xf]
    %v238 = vld [vmem:[#allocation6 + $0x114] sm:$0xf]
    %v239 = vld [vmem:[#allocation6 + $0x118] sm:$0xf]
    %v240 = vld [vmem:[#allocation6 + $0x11c] sm:$0xf]
    %v241 = vld [vmem:[#allocation6 + $0x120] sm:$0xf]
    %v242 = vld [vmem:[#allocation6 + $0x124] sm:$0xf]
    %v243 = vld [vmem:[#allocation6 + $0x128] sm:$0xf]
    %v244 = vld [vmem:[#allocation6 + $0x12c] sm:$0xf]
    %v245 = vld [vmem:[#allocation6 + $0x130] sm:$0xf]
    %v246 = vld [vmem:[#allocation6 + $0x134] sm:$0xf]
    %v247 = vld [vmem:[#allocation6 + $0x138] sm:$0xf]
    %v248 = vld [vmem:[#allocation6 + $0x13c] sm:$0xf]
    %v249 = vld [vmem:[#allocation6 + $0x140] sm:$0xf]
    %v250 = vld [vmem:[#allocation6 + $0x144] sm:$0xf]
    %v251 = vld [vmem:[#allocation6 + $0x148] sm:$0xf]
    %v252 = vld [vmem:[#allocation6 + $0x14c] sm:$0xf]
    %v253 = vld [vmem:[#allocation6 + $0x150] sm:$0xf]
    %v254 = vld [vmem:[#allocation6 + $0x154] sm:$0xf]
    %v255 = vld [vmem:[#allocation6 + $0x158] sm:$0xf]
    %v256 = vld [vmem:[#allocation6 + $0x15c] sm:$0xf]
    %v257 = vld [vmem:[#allocation6 + $0x160] sm:$0xf]
    %v258 = vld [vmem:[#allocation6 + $0x164] sm:$0xf]
    %v259 = vld [vmem:[#allocation6 + $0x168] sm:$0xf]
    %v260 = vld [vmem:[#allocation6 + $0x16c] sm:$0xf]
    %v261 = vld [vmem:[#allocation6 + $0x170] sm:$0xf]
    %v262 = vld [vmem:[#allocation6 + $0x174] sm:$0xf]
    %v263 = vld [vmem:[#allocation6 + $0x178] sm:$0xf]
    %v264 = vld [vmem:[#allocation6 + $0x17c] sm:$0xf]
    %v265 = vld [vmem:[#allocation6 + $0x180] sm:$0xf]
    %v266 = vld [vmem:[#allocation6 + $0x184] sm:$0xf]
    %v267 = vld [vmem:[#allocation6 + $0x188] sm:$0xf]
    %v268 = vld [vmem:[#allocation6 + $0x18c] sm:$0xf]
    %v269 = vld [vmem:[#allocation6 + $0x190] sm:$0xf]
    %v270 = vld [vmem:[#allocation6 + $0x194] sm:$0xf]
    %v271 = vld [vmem:[#allocation6 + $0x198] sm:$0xf]
    %v272 = vld [vmem:[#allocation6 + $0x19c] sm:$0xf]
    %v273 = vld [vmem:[#allocation6 + $0x1a0] sm:$0xf]
    %v274 = vld [vmem:[#allocation6 + $0x1a4] sm:$0xf]
    %v275 = vld [vmem:[#allocation6 + $0x1a8] sm:$0xf]
    %v276 = vld [vmem:[#allocation6 + $0x1ac] sm:$0xf]
    %v277 = vld [vmem:[#allocation6 + $0x1b0] sm:$0xf]
    %v278 = vld [vmem:[#allocation6 + $0x1b4] sm:$0xf]
    %v279 = vld [vmem:[#allocation6 + $0x1b8] sm:$0xf]
    %v280 = vld [vmem:[#allocation6 + $0x1bc] sm:$0xf]
    %v281 = vld [vmem:[#allocation6 + $0x1c0] sm:$0xf]
    %v282 = vld [vmem:[#allocation6 + $0x1c4] sm:$0xf]
    %v283 = vld [vmem:[#allocation6 + $0x1c8] sm:$0xf]
    %v284 = vld [vmem:[#allocation6 + $0x1cc] sm:$0xf]
    %v285 = vld [vmem:[#allocation6 + $0x1d0] sm:$0xf]
    %v286 = vld [vmem:[#allocation6 + $0x1d4] sm:$0xf]
    %v287 = vld [vmem:[#allocation6 + $0x1d8] sm:$0xf]
    %v288 = vld [vmem:[#allocation6 + $0x1dc] sm:$0xf]
    %v289 = vld [vmem:[#allocation6 + $0x1e0] sm:$0xf]
    %v290 = vld [vmem:[#allocation6 + $0x1e4] sm:$0xf]
    %v291 = vld [vmem:[#allocation6 + $0x1e8] sm:$0xf]
    %v292 = vld [vmem:[#allocation6 + $0x1ec] sm:$0xf]
    %v293 = vld [vmem:[#allocation6 + $0x1f0] sm:$0xf]
    %v294 = vld [vmem:[#allocation6 + $0x1f4] sm:$0xf]
    %v295 = vld [vmem:[#allocation6 + $0x1f8] sm:$0xf]
    %v296 = vld [vmem:[#allocation6 + $0x1fc] sm:$0xf]
    %v297 = vld [vmem:[%s3] sm:$0x1]
    %v299 = vlaneseq
    %v300 = vshrl.u32 %v299, 7
    %v301 = vsub.s32 0, %v300
    %v302 = vrot.slane %v297, %v301
    %v432 = vunpack.c.l.b16 %v169
    %v433 = vunpack.c.l.b16 %v170
    %v434 = vunpack.c.l.b16 %v171
    %v435 = vunpack.c.l.b16 %v172
    %v436 = vunpack.c.l.b16 %v173
    %v437 = vunpack.c.l.b16 %v174
    %v438 = vunpack.c.l.b16 %v175
    %v439 = vunpack.c.l.b16 %v176
    %v440 = vunpack.c.l.b16 %v177
    %v441 = vunpack.c.l.b16 %v178
    %v442 = vunpack.c.l.b16 %v179
    %v443 = vunpack.c.l.b16 %v180
    %v444 = vunpack.c.l.b16 %v181
    %v445 = vunpack.c.l.b16 %v182
    %v446 = vunpack.c.l.b16 %v183
    %v447 = vunpack.c.l.b16 %v184
    %v448 = vunpack.c.l.b16 %v185
    %v449 = vunpack.c.l.b16 %v186
    %v450 = vunpack.c.l.b16 %v187
    %v451 = vunpack.c.l.b16 %v188
    %v452 = vunpack.c.l.b16 %v189
    %v453 = vunpack.c.l.b16 %v190
    %v454 = vunpack.c.l.b16 %v191
    %v455 = vunpack.c.l.b16 %v192
    %v456 = vunpack.c.l.b16 %v193
    %v457 = vunpack.c.l.b16 %v194
    %v458 = vunpack.c.l.b16 %v195
    %v459 = vunpack.c.l.b16 %v196
    %v460 = vunpack.c.l.b16 %v197
    %v461 = vunpack.c.l.b16 %v198
    %v462 = vunpack.c.l.b16 %v199
    %v463 = vunpack.c.l.b16 %v200
    %v464 = vunpack.c.l.b16 %v201
    %v465 = vunpack.c.l.b16 %v202
    %v466 = vunpack.c.l.b16 %v203
    %v467 = vunpack.c.l.b16 %v204
    %v468 = vunpack.c.l.b16 %v205
    %v469 = vunpack.c.l.b16 %v206
    %v470 = vunpack.c.l.b16 %v207
    %v471 = vunpack.c.l.b16 %v208
    %v472 = vunpack.c.l.b16 %v209
    %v473 = vunpack.c.l.b16 %v210
    %v474 = vunpack.c.l.b16 %v211
    %v475 = vunpack.c.l.b16 %v212
    %v476 = vunpack.c.l.b16 %v213
    %v477 = vunpack.c.l.b16 %v214
    %v478 = vunpack.c.l.b16 %v215
    %v479 = vunpack.c.l.b16 %v216
    %v480 = vunpack.c.l.b16 %v217
    %v481 = vunpack.c.l.b16 %v218
    %v482 = vunpack.c.l.b16 %v219
    %v483 = vunpack.c.l.b16 %v220
    %v484 = vunpack.c.l.b16 %v221
    %v485 = vunpack.c.l.b16 %v222
    %v486 = vunpack.c.l.b16 %v223
    %v487 = vunpack.c.l.b16 %v224
    %v488 = vunpack.c.l.b16 %v225
    %v489 = vunpack.c.l.b16 %v226
    %v490 = vunpack.c.l.b16 %v227
    %v491 = vunpack.c.l.b16 %v228
    %v492 = vunpack.c.l.b16 %v229
    %v493 = vunpack.c.l.b16 %v230
    %v494 = vunpack.c.l.b16 %v231
    %v495 = vunpack.c.l.b16 %v232
    %v496 = vunpack.c.l.b16 %v233
    %v497 = vunpack.c.l.b16 %v234
    %v498 = vunpack.c.l.b16 %v235
    %v499 = vunpack.c.l.b16 %v236
    %v500 = vunpack.c.l.b16 %v237
    %v501 = vunpack.c.l.b16 %v238
    %v502 = vunpack.c.l.b16 %v239
    %v503 = vunpack.c.l.b16 %v240
    %v504 = vunpack.c.l.b16 %v241
    %v505 = vunpack.c.l.b16 %v242
    %v506 = vunpack.c.l.b16 %v243
    %v507 = vunpack.c.l.b16 %v244
    %v508 = vunpack.c.l.b16 %v245
    %v509 = vunpack.c.l.b16 %v246
    %v510 = vunpack.c.l.b16 %v247
    %v511 = vunpack.c.l.b16 %v248
    %v512 = vunpack.c.l.b16 %v249
    %v513 = vunpack.c.l.b16 %v250
    %v514 = vunpack.c.l.b16 %v251
    %v515 = vunpack.c.l.b16 %v252
    %v516 = vunpack.c.l.b16 %v253
    %v517 = vunpack.c.l.b16 %v254
    %v518 = vunpack.c.l.b16 %v255
    %v519 = vunpack.c.l.b16 %v256
    %v520 = vunpack.c.l.b16 %v257
    %v521 = vunpack.c.l.b16 %v258
    %v522 = vunpack.c.l.b16 %v259
    %v523 = vunpack.c.l.b16 %v260
    %v524 = vunpack.c.l.b16 %v261
    %v525 = vunpack.c.l.b16 %v262
    %v526 = vunpack.c.l.b16 %v263
    %v527 = vunpack.c.l.b16 %v264
    %v528 = vunpack.c.l.b16 %v265
    %v529 = vunpack.c.l.b16 %v266
    %v530 = vunpack.c.l.b16 %v267
    %v531 = vunpack.c.l.b16 %v268
    %v532 = vunpack.c.l.b16 %v269
    %v533 = vunpack.c.l.b16 %v270
    %v534 = vunpack.c.l.b16 %v271
    %v535 = vunpack.c.l.b16 %v272
    %v536 = vunpack.c.l.b16 %v273
    %v537 = vunpack.c.l.b16 %v274
    %v538 = vunpack.c.l.b16 %v275
    %v539 = vunpack.c.l.b16 %v276
    %v540 = vunpack.c.l.b16 %v277
    %v541 = vunpack.c.l.b16 %v278
    %v542 = vunpack.c.l.b16 %v279
    %v543 = vunpack.c.l.b16 %v280
    %v544 = vunpack.c.l.b16 %v281
    %v545 = vunpack.c.l.b16 %v282
    %v546 = vunpack.c.l.b16 %v283
    %v547 = vunpack.c.l.b16 %v284
    %v548 = vunpack.c.l.b16 %v285
    %v549 = vunpack.c.l.b16 %v286
    %v550 = vunpack.c.l.b16 %v287
    %v551 = vunpack.c.l.b16 %v288
    %v552 = vunpack.c.l.b16 %v289
    %v553 = vunpack.c.l.b16 %v290
    %v554 = vunpack.c.l.b16 %v291
    %v555 = vunpack.c.l.b16 %v292
    %v556 = vunpack.c.l.b16 %v293
    %v557 = vunpack.c.l.b16 %v294
    %v558 = vunpack.c.l.b16 %v295
    %v559 = vunpack.c.l.b16 %v296
    %v560 = vpack.c.b16 %v433, %v432
    %v561 = vpack.c.b16 %v435, %v434
    %v562 = vpack.c.b16 %v437, %v436
    %v563 = vpack.c.b16 %v439, %v438
    %v564 = vpack.c.b16 %v441, %v440
    %v565 = vpack.c.b16 %v443, %v442
    %v566 = vpack.c.b16 %v445, %v444
    %v567 = vpack.c.b16 %v447, %v446
    %v568 = vpack.c.b16 %v449, %v448
    %v569 = vpack.c.b16 %v451, %v450
    %v570 = vpack.c.b16 %v453, %v452
    %v571 = vpack.c.b16 %v455, %v454
    %v572 = vpack.c.b16 %v457, %v456
    %v573 = vpack.c.b16 %v459, %v458
    %v574 = vpack.c.b16 %v461, %v460
    %v575 = vpack.c.b16 %v463, %v462
    %v576 = vpack.c.b16 %v465, %v464
    %v577 = vpack.c.b16 %v467, %v466
    %v578 = vpack.c.b16 %v469, %v468
    %v579 = vpack.c.b16 %v471, %v470
    %v580 = vpack.c.b16 %v473, %v472
    %v581 = vpack.c.b16 %v475, %v474
    %v582 = vpack.c.b16 %v477, %v476
    %v583 = vpack.c.b16 %v479, %v478
    %v584 = vpack.c.b16 %v481, %v480
    %v585 = vpack.c.b16 %v483, %v482
    %v586 = vpack.c.b16 %v485, %v484
    %v587 = vpack.c.b16 %v487, %v486
    %v588 = vpack.c.b16 %v489, %v488
    %v589 = vpack.c.b16 %v491, %v490
    %v590 = vpack.c.b16 %v493, %v492
    %v591 = vpack.c.b16 %v495, %v494
    %v592 = vpack.c.b16 %v497, %v496
    %v593 = vpack.c.b16 %v499, %v498
    %v594 = vpack.c.b16 %v501, %v500
    %v595 = vpack.c.b16 %v503, %v502
    %v596 = vpack.c.b16 %v505, %v504
    %v597 = vpack.c.b16 %v507, %v506
    %v598 = vpack.c.b16 %v509, %v508
    %v599 = vpack.c.b16 %v511, %v510
    %v600 = vpack.c.b16 %v513, %v512
    %v601 = vpack.c.b16 %v515, %v514
    %v602 = vpack.c.b16 %v517, %v516
    %v603 = vpack.c.b16 %v519, %v518
    %v604 = vpack.c.b16 %v521, %v520
    %v605 = vpack.c.b16 %v523, %v522
    %v606 = vpack.c.b16 %v525, %v524
    %v607 = vpack.c.b16 %v527, %v526
    %v608 = vpack.c.b16 %v529, %v528
    %v609 = vpack.c.b16 %v531, %v530
    %v610 = vpack.c.b16 %v533, %v532
    %v611 = vpack.c.b16 %v535, %v534
    %v612 = vpack.c.b16 %v537, %v536
    %v613 = vpack.c.b16 %v539, %v538
    %v614 = vpack.c.b16 %v541, %v540
    %v615 = vpack.c.b16 %v543, %v542
    %v616 = vpack.c.b16 %v545, %v544
    %v617 = vpack.c.b16 %v547, %v546
    %v618 = vpack.c.b16 %v549, %v548
    %v619 = vpack.c.b16 %v551, %v550
    %v620 = vpack.c.b16 %v553, %v552
    %v621 = vpack.c.b16 %v555, %v554
    %v622 = vpack.c.b16 %v557, %v556
    %v623 = vpack.c.b16 %v559, %v558
    %688 = vmatprep.subr.bf16.mxu0 0
    %689 = vmatpush1.bf16.msra.mxu0 %v560
    %690 = vmatprep.subr.bf16.mxu0 0
    %691 = vmatpush1.bf16.msra.mxu0 %v561
    %692 = vmatprep.subr.bf16.mxu0 0
    %693 = vmatpush1.bf16.msra.mxu0 %v562
    %694 = vmatprep.subr.bf16.mxu0 0
    %695 = vmatpush1.bf16.msra.mxu0 %v563
    %696 = vmatprep.subr.bf16.mxu0 0
    %697 = vmatpush1.bf16.msra.mxu0 %v564
    %698 = vmatprep.subr.bf16.mxu0 0
    %699 = vmatpush1.bf16.msra.mxu0 %v565
    %700 = vmatprep.subr.bf16.mxu0 0
    %701 = vmatpush1.bf16.msra.mxu0 %v566
    %702 = vmatprep.subr.bf16.mxu0 0
    %703 = vmatpush1.bf16.msra.mxu0 %v567
    %704 = vmatprep.subr.bf16.mxu0 0
    %705 = vmatpush1.bf16.msra.mxu0 %v568
    %706 = vmatprep.subr.bf16.mxu0 0
    %707 = vmatpush1.bf16.msra.mxu0 %v569
    %708 = vmatprep.subr.bf16.mxu0 0
    %709 = vmatpush1.bf16.msra.mxu0 %v570
    %710 = vmatprep.subr.bf16.mxu0 0
    %711 = vmatpush1.bf16.msra.mxu0 %v571
    %712 = vmatprep.subr.bf16.mxu0 0
    %713 = vmatpush1.bf16.msra.mxu0 %v572
    %714 = vmatprep.subr.bf16.mxu0 0
    %715 = vmatpush1.bf16.msra.mxu0 %v573
    %716 = vmatprep.subr.bf16.mxu0 0
    %717 = vmatpush1.bf16.msra.mxu0 %v574
    %718 = vmatprep.subr.bf16.mxu0 0
    %719 = vmatpush1.bf16.msra.mxu0 %v575
    %720 = vmatprep.mubr.bf16.mxu0 %v162
    %721 = vmatmul.mubr.bf16.gmra.mrb[0].mxu0 %v161
    %v722 = vpop.f32.mrb[0].mxu0
    %v723 = vadd.f32 %v302, %v722
    %v724 = vpop.f32.mrb[0].mxu0
    %v725 = vpop.f32.mrb[0].mxu0
    %v726 = vpop.f32.mrb[0].mxu0
    %727 = vdwg.mxu0
    %728 = vmatprep.subr.bf16.mxu0 0
    %729 = vmatpush1.bf16.msra.mxu0 %v576
    %730 = vmatprep.subr.bf16.mxu0 0
    %731 = vmatpush1.bf16.msra.mxu0 %v577
    %732 = vmatprep.subr.bf16.mxu0 0
    %733 = vmatpush1.bf16.msra.mxu0 %v578
    %734 = vmatprep.subr.bf16.mxu0 0
    %735 = vmatpush1.bf16.msra.mxu0 %v579
    %736 = vmatprep.subr.bf16.mxu0 0
    %737 = vmatpush1.bf16.msra.mxu0 %v580
    %738 = vmatprep.subr.bf16.mxu0 0
    %739 = vmatpush1.bf16.msra.mxu0 %v581
    %740 = vmatprep.subr.bf16.mxu0 0
    %741 = vmatpush1.bf16.msra.mxu0 %v582
    %742 = vmatprep.subr.bf16.mxu0 0
    %743 = vmatpush1.bf16.msra.mxu0 %v583
    %744 = vmatprep.subr.bf16.mxu0 0
    %745 = vmatpush1.bf16.msra.mxu0 %v584
    %746 = vmatprep.subr.bf16.mxu0 0
    %747 = vmatpush1.bf16.msra.mxu0 %v585
    %748 = vmatprep.subr.bf16.mxu0 0
    %749 = vmatpush1.bf16.msra.mxu0 %v586
    %750 = vmatprep.subr.bf16.mxu0 0
    %751 = vmatpush1.bf16.msra.mxu0 %v587
    %752 = vmatprep.subr.bf16.mxu0 0
    %753 = vmatpush1.bf16.msra.mxu0 %v588
    %754 = vmatprep.subr.bf16.mxu0 0
    %755 = vmatpush1.bf16.msra.mxu0 %v589
    %756 = vmatprep.subr.bf16.mxu0 0
    %757 = vmatpush1.bf16.msra.mxu0 %v590
    %758 = vmatprep.subr.bf16.mxu0 0
    %759 = vmatpush1.bf16.msra.mxu0 %v591
    %760 = vmatprep.mubr.bf16.mxu0 %v164
    %761 = vmatmul.mubr.bf16.gmra.mrb[0].mxu0 %v163
    %v762 = vpop.f32.mrb[0].mxu0
    %v763 = vadd.f32 %v723, %v762
    %v764 = vpop.f32.mrb[0].mxu0
    %v765 = vpop.f32.mrb[0].mxu0
    %v766 = vpop.f32.mrb[0].mxu0
    %767 = vdwg.mxu0
    %768 = vmatprep.subr.bf16.mxu0 0
    %769 = vmatpush1.bf16.msra.mxu0 %v592
    %770 = vmatprep.subr.bf16.mxu0 0
    %771 = vmatpush1.bf16.msra.mxu0 %v593
    %772 = vmatprep.subr.bf16.mxu0 0
    %773 = vmatpush1.bf16.msra.mxu0 %v594
    %774 = vmatprep.subr.bf16.mxu0 0
    %775 = vmatpush1.bf16.msra.mxu0 %v595
    %776 = vmatprep.subr.bf16.mxu0 0
    %777 = vmatpush1.bf16.msra.mxu0 %v596
    %778 = vmatprep.subr.bf16.mxu0 0
    %779 = vmatpush1.bf16.msra.mxu0 %v597
    %780 = vmatprep.subr.bf16.mxu0 0
    %781 = vmatpush1.bf16.msra.mxu0 %v598
    %782 = vmatprep.subr.bf16.mxu0 0
    %783 = vmatpush1.bf16.msra.mxu0 %v599
    %784 = vmatprep.subr.bf16.mxu0 0
    %785 = vmatpush1.bf16.msra.mxu0 %v600
    %786 = vmatprep.subr.bf16.mxu0 0
    %787 = vmatpush1.bf16.msra.mxu0 %v601
    %788 = vmatprep.subr.bf16.mxu0 0
    %789 = vmatpush1.bf16.msra.mxu0 %v602
    %790 = vmatprep.subr.bf16.mxu0 0
    %791 = vmatpush1.bf16.msra.mxu0 %v603
    %792 = vmatprep.subr.bf16.mxu0 0
    %793 = vmatpush1.bf16.msra.mxu0 %v604
    %794 = vmatprep.subr.bf16.mxu0 0
    %795 = vmatpush1.bf16.msra.mxu0 %v605
    %796 = vmatprep.subr.bf16.mxu0 0
    %797 = vmatpush1.bf16.msra.mxu0 %v606
    %798 = vmatprep.subr.bf16.mxu0 0
    %799 = vmatpush1.bf16.msra.mxu0 %v607
    %800 = vmatprep.mubr.bf16.mxu0 %v166
    %801 = vmatmul.mubr.bf16.gmra.mrb[0].mxu0 %v165
    %v802 = vpop.f32.mrb[0].mxu0
    %v803 = vadd.f32 %v763, %v802
    %v804 = vpop.f32.mrb[0].mxu0
    %v805 = vpop.f32.mrb[0].mxu0
    %v806 = vpop.f32.mrb[0].mxu0
    %807 = vdwg.mxu0
    %808 = vmatprep.subr.bf16.mxu0 0
    %809 = vmatpush1.bf16.msra.mxu0 %v608
    %810 = vmatprep.subr.bf16.mxu0 0
    %811 = vmatpush1.bf16.msra.mxu0 %v609
    %812 = vmatprep.subr.bf16.mxu0 0
    %813 = vmatpush1.bf16.msra.mxu0 %v610
    %814 = vmatprep.subr.bf16.mxu0 0
    %815 = vmatpush1.bf16.msra.mxu0 %v611
    %816 = vmatprep.subr.bf16.mxu0 0
    %817 = vmatpush1.bf16.msra.mxu0 %v612
    %818 = vmatprep.subr.bf16.mxu0 0
    %819 = vmatpush1.bf16.msra.mxu0 %v613
    %820 = vmatprep.subr.bf16.mxu0 0
    %821 = vmatpush1.bf16.msra.mxu0 %v614
    %822 = vmatprep.subr.bf16.mxu0 0
    %823 = vmatpush1.bf16.msra.mxu0 %v615
    %824 = vmatprep.subr.bf16.mxu0 0
    %825 = vmatpush1.bf16.msra.mxu0 %v616
    %826 = vmatprep.subr.bf16.mxu0 0
    %827 = vmatpush1.bf16.msra.mxu0 %v617
    %828 = vmatprep.subr.bf16.mxu0 0
    %829 = vmatpush1.bf16.msra.mxu0 %v618
    %830 = vmatprep.subr.bf16.mxu0 0
    %831 = vmatpush1.bf16.msra.mxu0 %v619
    %832 = vmatprep.subr.bf16.mxu0 0
    %833 = vmatpush1.bf16.msra.mxu0 %v620
    %834 = vmatprep.subr.bf16.mxu0 0
    %835 = vmatpush1.bf16.msra.mxu0 %v621
    %836 = vmatprep.subr.bf16.mxu0 0
    %837 = vmatpush1.bf16.msra.mxu0 %v622
    %838 = vmatprep.subr.bf16.mxu0 0
    %839 = vmatpush1.bf16.msra.mxu0 %v623
    %840 = vmatprep.mubr.bf16.mxu0 %v168
    %841 = vmatmul.mubr.bf16.gmra.mrb[0].mxu0 %v167
    %v842 = vpop.f32.mrb[0].mxu0
    %v843 = vadd.f32 %v803, %v842
    %v844 = vpop.f32.mrb[0].mxu0
    %v845 = vpop.f32.mrb[0].mxu0
    %v846 = vpop.f32.mrb[0].mxu0
    %847 = vdwg.mxu0
    %v848 = vmul.f32 %v843, 0.2
    %v849 = vmax.f32 %v843, %v848
    %v850 = vld [vmem:[%s4] sm:$0x1]
    %v852 = vlaneseq
    %v853 = vshrl.u32 %v852, 7
    %v854 = vsub.s32 0, %v853
    %v855 = vrot.slane %v850, %v854
    %v857 = vmul.f32 %v849, %v855
    %vm858 = vcmask 1043456
    %v859 = vsel %vm858, %v857, 0.0
    %860 = vadd.xlane.f32.xlu0 %v859
    %v861 = vpop.xlane.xlu0 %860
    %vm862 = vcmask 1024
    %863 = vst.msk [vmem:[%s5] sm:$0x3] %vm862, %v861
    %vm864 = vcmask 3074
    %865 = vst.msk [vmem:[%s6 - $0x2] sm:$0xc] %vm864, %v861
    // Predicated region
    $region34: #{tpu_custom_call.1} parent=1 // pred_check
      _
    $region35: #{tpu_custom_call.1} parent=1 // pred_check_branch
      %867 = sbr.rel (0) target = $region37
    $region36: #{tpu_custom_call.1} parent=1 // pred_region
      _
    $region37: #{tpu_custom_call.1} parent=1 // pred_fallthru
      _
    // Predicated region
    $region38: #{tpu_custom_call.1} parent=1 // pred_check
      _
    $region39: #{tpu_custom_call.1} parent=1 // pred_check_branch
      %869 = sbr.rel (0) target = $region41
    $region40: #{tpu_custom_call.1} parent=1 // pred_region
      _
    $region41: #{tpu_custom_call.1} parent=1 // pred_fallthru
      _
    // Predicated region
    $region42: #{tpu_custom_call.1} parent=1 // pred_check
      _
    $region43: #{tpu_custom_call.1} parent=1 // pred_check_branch
      %871 = sbr.rel (0) target = $region45
    $region44: #{tpu_custom_call.1} parent=1 // pred_region
      _
    $region45: #{tpu_custom_call.1} parent=1 // pred_fallthru
      _
    // Predicated region
    $region46: #{tpu_custom_call.1} parent=1 // pred_check
      _
    $region47: #{tpu_custom_call.1} parent=1 // pred_check_branch
      %873 = sbr.rel (0) target = $region49
    $region48: #{tpu_custom_call.1} parent=1 // pred_region
      _
    $region49: #{tpu_custom_call.1} parent=1 // pred_fallthru
      _
    %874 = vsyncpa [#allocation3], 1
    %875 = vsyncpa [#allocation5], 1

</llo_original>
